<compile_context>
chip_gen: v5e
topology: v5e:2x2
jax: 0.10.0
libtpu: 0.0.40
codegen_flags: <defaults>
</compile_context>

<pallas_src>
import jax
import jax.numpy as jnp
from jax.experimental import pallas as pl
from jax.experimental.pallas import tpu as pltpu


# ---------------------------------------------------------------------------
# VMEM footprint / block sizing helpers
# ---------------------------------------------------------------------------

_SUBLANE_BY_ITEMSIZE = {1: 32, 2: 16, 4: 8, 8: 8}


def _tiled_slice_bytes(h: int, w: int, itemsize: int) -> int:
    """Bytes one (h, w) channel-slice occupies in VMEM after (sublane, 128) tiling."""
    sub = _SUBLANE_BY_ITEMSIZE.get(itemsize, 8)
    rows = pl.cdiv(h, sub) * sub
    cols = pl.cdiv(w, 128) * 128
    return rows * cols * itemsize


def _vmem_config():
    """Generation-aware block budget / scoped-VMEM limit."""
    try:
        kind = jax.devices()[0].device_kind.lower()
    except Exception:  # pragma: no cover - defensive
        kind = ""
    if "v7" in kind:
        # 64 MiB physical VMEM, 2 TensorCores -> tighter blocks, keep >= 2 grid steps.
        return {"budget": 24 * 2**20, "vmem_limit": 48 * 2**20, "two_steps": True}
    if "v6" in kind or "v5e" in kind or "v5 lite" in kind or "v5lite" in kind:
        # 128 MiB physical VMEM, single TensorCore -> biggest single-step blocks win.
        return {"budget": 48 * 2**20, "vmem_limit": 96 * 2**20, "two_steps": False}
    # Unknown part (v4/v5p/emulator): use the most conservative (v7x-safe) numbers.
    return {"budget": 24 * 2**20, "vmem_limit": 48 * 2**20, "two_steps": False}


def _choose_block_channels(NC: int, H: int, W: int, Ho: int, Wo: int,
                           itemsize: int, *, budget_bytes: int,
                           two_steps: bool) -> int:
    """Largest channel-block whose double-buffered (input + output) *tiled* VMEM
    footprint fits the budget.  No divisibility requirement (ragged grid is fine)."""
    per_channel = (_tiled_slice_bytes(H, W, itemsize)
                   + _tiled_slice_bytes(Ho, Wo, itemsize))
    per_channel *= 2  # double buffering of both the input and output blocks
    cb = max(1, budget_bytes // per_channel)
    if two_steps and NC >= 2:
        # Keep at least 2 grid steps so megacore (v7x) can split the parallel axis.
        cb = min(cb, pl.cdiv(NC, 2))
    return int(min(cb, NC))


# ---------------------------------------------------------------------------
# Kernel
# ---------------------------------------------------------------------------

def _make_circular_pad_kernel(pad: int, H: int, W: int, Cb: int):
    Ho, Wo = H + 2 * pad, W + 2 * pad

    def kernel(x_ref, o_ref):
        # x_ref: (Cb, H, W)   o_ref: (Cb, Ho, Wo)
        xv = x_ref[...]
        # Middle band = wrap-left ++ body ++ wrap-right, one full-width store per block
        # (fewer, denser vst ops than three lane-offset masked stores).
        mid = jnp.concatenate([xv[:, :, W - pad:], xv, xv[:, :, :pad]], axis=-1)
        o_ref[:, pad:pad + H, :] = mid
        # H-pad row bands (including corners) stay zero — matches the torch code,
        # which only overwrites the W-pad columns.
        zero_band = jnp.zeros((Cb, pad, Wo), dtype=o_ref.dtype)
        o_ref[:, 0:pad, :] = zero_band
        o_ref[:, pad + H:Ho, :] = zero_band

    return kernel


# ---------------------------------------------------------------------------
# Wrapper
# ---------------------------------------------------------------------------

def circular_padding(x: jax.Array, pad: int, *, block_channels: int | None = None
                     ) -> jax.Array:
    """Pallas implementation of CircularPadding.forward for NCHW input."""
    if pad == 0:
        return x

    N, C, H, W = x.shape
    if pad > W:
        # Documented divergence: the torch module would silently wrap zeros here;
        # fail loudly instead.
        raise ValueError(f"CircularPadding requires pad <= W (pad={pad}, W={W})")

    Ho, Wo = H + 2 * pad, W + 2 * pad
    NC = N * C

    cfg = _vmem_config()
    if block_channels is None:
        Cb = _choose_block_channels(NC, H, W, Ho, Wo, x.dtype.itemsize,
                                    budget_bytes=cfg["budget"],
                                    two_steps=cfg["two_steps"])
    else:
        Cb = block_channels
    Cb = max(1, min(int(Cb), NC))
    grid = (pl.cdiv(NC, Cb),)   # ragged last block is handled by Pallas clamping

    kernel = _make_circular_pad_kernel(pad, H, W, Cb)

    # Free reshape: NCHW is contiguous over (N*C, H, W).
    x_flat = x.reshape(NC, H, W)

    out_flat = pl.pallas_call(
        kernel,
        out_shape=jax.ShapeDtypeStruct((NC, Ho, Wo), x.dtype),
        grid_spec=pl.GridSpec(
            grid=grid,
            # Last two block dims equal the full array dims -> no (8,128)
            # divisibility constraint on H/W.
            in_specs=[pl.BlockSpec((Cb, H, W), lambda i: (i, 0, 0))],
            out_specs=pl.BlockSpec((Cb, Ho, Wo), lambda i: (i, 0, 0)),
        ),
        compiler_params=pltpu.CompilerParams(
            dimension_semantics=("parallel",),
            vmem_limit_bytes=cfg["vmem_limit"],
        ),
    )(x_flat)

    return out_flat.reshape(N, C, Ho, Wo)


# ---------------------------------------------------------------------------
# Pure-JAX reference (mirrors the PyTorch code exactly) + self-test
# ---------------------------------------------------------------------------

def _reference_circular_padding(x: jax.Array, pad: int) -> jax.Array:
    if pad == 0:
        return x
    x = jnp.pad(x, ((0, 0), (0, 0), (pad, pad), (pad, pad)),
                mode="constant", constant_values=0)
    x = x.at[:, :, :, 0:pad].set(x[:, :, :, -2 * pad:-pad])
    x = x.at[:, :, :, -pad:].set(x[:, :, :, pad:2 * pad])
    return x


if __name__ == "__main__":
    key = jax.random.PRNGKey(0)

    # (shape, pad, dtype, forced block_channels or None)
    cases = [
        ((2, 4, 16, 16), 2, jnp.float32, None),      # basic
        ((2, 128, 16, 16), 4, jnp.float32, None),    # conv-sized channels, auto blocking
        ((2, 32, 16, 16), 3, jnp.bfloat16, None),    # bf16 (16-row sublane budgeting)
        ((1, 5, 16, 16), 1, jnp.float32, 3),         # forces ragged last block (5 = 3 + 2)
        ((2, 4, 16, 16), 0, jnp.float32, None),      # pad=0 passthrough
    ]

    for shape, pad, dtype, bc in cases:
        key, sub = jax.random.split(key)
        x = jax.random.normal(sub, shape, dtype=jnp.float32).astype(dtype)

        out = jax.block_until_ready(circular_padding(x, pad, block_channels=bc))
        ref = _reference_circular_padding(x, pad)

        N, C, H, W = shape
        assert out.shape == (N, C, H + 2 * pad, W + 2 * pad), out.shape
        assert out.dtype == x.dtype
        # Pure data movement -> exact equality.
        assert jnp.array_equal(out, ref), f"mismatch for shape={shape} pad={pad} dtype={dtype}"

    print("KERNEL_OK")
</pallas_src>

<mosaic_0001>
module attributes {stable_mosaic.version = 11 : i64} {
  func.func @kernel(%arg0: i32, %arg1: memref<8x16x16xf32, #tpu.memory_space<vmem>>, %arg2: memref<8x20x20xf32, #tpu.memory_space<vmem>>) attributes {dimension_semantics = [#tpu.dimension_semantics<parallel>], iteration_bounds = array<i64: 1>, scalar_prefetch = 0 : i64, scratch_operands = 0 : i64, tpu.core_type = #tpu.core_type<tc>, window_params = [{transform_indices = @transform_0, window_bounds = array<i64: 8, 16, 16>}, {transform_indices = @transform_1, window_bounds = array<i64: 8, 20, 20>}]} {
    %c0 = arith.constant 0 : index
    %c0_0 = arith.constant 0 : index
    %c0_1 = arith.constant 0 : index
    %0 = vector.load %arg1[%c0, %c0_0, %c0_1] : memref<8x16x16xf32, #tpu.memory_space<vmem>>, vector<8x16x16xf32>
    %1 = vector.extract_strided_slice %0 {offsets = [0, 0, 14], sizes = [8, 16, 2], strides = [1, 1, 1]} : vector<8x16x16xf32> to vector<8x16x2xf32>
    %2 = vector.extract_strided_slice %0 {offsets = [0, 0, 0], sizes = [8, 16, 2], strides = [1, 1, 1]} : vector<8x16x16xf32> to vector<8x16x2xf32>
    %3 = tpu.concatenate %1, %0, %2 in 2 : vector<8x16x2xf32>, vector<8x16x16xf32>, vector<8x16x2xf32> -> vector<8x16x20xf32>
    %c0_2 = arith.constant 0 : index
    %c2 = arith.constant 2 : index
    %c0_3 = arith.constant 0 : index
    %4 = vector.load %arg2[%c0_2, %c2, %c0_3] : memref<8x20x20xf32, #tpu.memory_space<vmem>>, vector<8x16x20xf32>
    tpu.vector_store %arg2[%c0_2, %c2, %c0_3], %3 {strides = array<i32>} : memref<8x20x20xf32, #tpu.memory_space<vmem>>, vector<8x16x20xf32>,
    %cst = arith.constant 0.000000e+00 : f32
    %5 = vector.broadcast %cst : f32 to vector<8x2x20xf32>
    %c0_4 = arith.constant 0 : index
    %c0_5 = arith.constant 0 : index
    %c0_6 = arith.constant 0 : index
    %6 = vector.load %arg2[%c0_4, %c0_5, %c0_6] : memref<8x20x20xf32, #tpu.memory_space<vmem>>, vector<8x2x20xf32>
    tpu.vector_store %arg2[%c0_4, %c0_5, %c0_6], %5 {strides = array<i32>} : memref<8x20x20xf32, #tpu.memory_space<vmem>>, vector<8x2x20xf32>,
    %c0_7 = arith.constant 0 : index
    %c18 = arith.constant 18 : index
    %c0_8 = arith.constant 0 : index
    %7 = vector.load %arg2[%c0_7, %c18, %c0_8] : memref<8x20x20xf32, #tpu.memory_space<vmem>>, vector<8x2x20xf32>
    tpu.vector_store %arg2[%c0_7, %c18, %c0_8], %5 {strides = array<i32>} : memref<8x20x20xf32, #tpu.memory_space<vmem>>, vector<8x2x20xf32>,
    return
  }
  func.func @transform_0(%arg0: i32) -> (i32, i32, i32) {
    %c0_i32 = arith.constant 0 : i32
    %c0_i32_0 = arith.constant 0 : i32
    %c0_i32_1 = arith.constant 0 : i32
    return %arg0, %c0_i32, %c0_i32_0 : i32, i32, i32
  }
  func.func @transform_1(%arg0: i32) -> (i32, i32, i32) {
    %c0_i32 = arith.constant 0 : i32
    %c0_i32_0 = arith.constant 0 : i32
    %c0_i32_1 = arith.constant 0 : i32
    return %arg0, %c0_i32, %c0_i32_0 : i32, i32, i32
  }
}

</mosaic_0001>

<llo_original>
// kernel: tpu_custom_call.1
$region0: #{tpu_custom_call.1}
  #allocation0 [shape = 'u32[]', space=smem, size = 0x4, offset = 0x4, fixed_abs, tag = 'smem constant byte address 0x4 - core index']
  #allocation1 [shape = 'u32[72,128]{1,0:T(1,128)}', space=vmem, size = 0x9000, scoped, tag = 'internal scratch']
  %s0 = inlined_call_operand.hbm [shape: f32[8,16,16], index: 0, kind: input, shape index: {}]
  %s1 = inlined_call_operand.vmem [shape: f32[8,20,20], index: 1, kind: output, shape index: {}]
  %s2 = sld [smem:[#allocation0]]
  $region18: #{tpu_custom_call.1} parent=0
    _
  %s4 = ssub.s32 1, %s2
  %s5 = scalar_select 0, %s4, %s2
  $region1: #{tpu_custom_call.1} parent=0
    #allocation2 [shape = 'u8[65536]{0}', space=vmem, size = 0x10000, scoped, tag = 'input window, operand 0, single buffered']
    #allocation3 [shape = 's32[1]{0}', space=sflag, size = 0x4, scoped, tag = 'scoped memory for tpu_custom_call.1']
    %6 = vsyncpa [#allocation3], 0
    // Predicated region
    $region2: #{tpu_custom_call.1} parent=1 // pred_check
      _
    $region3: #{tpu_custom_call.1} parent=1 // pred_check_branch
      %8 = sbr.rel (0) target = $region5
    $region4: #{tpu_custom_call.1} parent=1 // pred_region
      %10 = vsyncadd [#allocation3], 0
      %s11 = sshll.u32 %s0, 4
      %s12 = int_to_ptr.hbm [resolvable:$true] %s11
      %s13 = sshll.u32 [#allocation2], 4
      %s14 = int_to_ptr.vmem [resolvable:$true] %s13
      %19 = dma.hbm_to_vmem [thread:$0]  %s12, 2048, %s14, [#allocation3], 128, 128, 8
    $region5: #{tpu_custom_call.1} parent=1 // pred_fallthru
      _
    // Predicated region
    $region6: #{tpu_custom_call.1} parent=1 // pred_check
      _
    $region7: #{tpu_custom_call.1} parent=1 // pred_check_branch
      %21 = sbr.rel (0) target = $region9
    $region8: #{tpu_custom_call.1} parent=1 // pred_region
      %23 = dma.done [#allocation3], 2048
    $region9: #{tpu_custom_call.1} parent=1 // pred_fallthru
      _
    %v24 = vld [vmem:[#allocation2] sm:$0xff]
    %v25 = vld [vmem:[#allocation2 + $0x8] sm:$0xff]
    %v26 = vld [vmem:[#allocation2 + $0x10] sm:$0xff]
    %v27 = vld [vmem:[#allocation2 + $0x18] sm:$0xff]
    %v28 = vld [vmem:[#allocation2 + $0x20] sm:$0xff]
    %v29 = vld [vmem:[#allocation2 + $0x28] sm:$0xff]
    %v30 = vld [vmem:[#allocation2 + $0x30] sm:$0xff]
    %v31 = vld [vmem:[#allocation2 + $0x38] sm:$0xff]
    %v32 = vld [vmem:[#allocation2 + $0x40] sm:$0xff]
    %v33 = vld [vmem:[#allocation2 + $0x48] sm:$0xff]
    %v34 = vld [vmem:[#allocation2 + $0x50] sm:$0xff]
    %v35 = vld [vmem:[#allocation2 + $0x58] sm:$0xff]
    %v36 = vld [vmem:[#allocation2 + $0x60] sm:$0xff]
    %v37 = vld [vmem:[#allocation2 + $0x68] sm:$0xff]
    %v38 = vld [vmem:[#allocation2 + $0x70] sm:$0xff]
    %v39 = vld [vmem:[#allocation2 + $0x78] sm:$0xff]
    %56 = vrot.lane.b32.xlu0 %v24, 114
    %v57 = vpop.permute.xlu0 %56
    %58 = vrot.lane.b32.xlu0 %v25, 114
    %v59 = vpop.permute.xlu0 %58
    %60 = vrot.lane.b32.xlu0 %v26, 114
    %v61 = vpop.permute.xlu0 %60
    %62 = vrot.lane.b32.xlu0 %v27, 114
    %v63 = vpop.permute.xlu0 %62
    %64 = vrot.lane.b32.xlu0 %v28, 114
    %v65 = vpop.permute.xlu0 %64
    %66 = vrot.lane.b32.xlu0 %v29, 114
    %v67 = vpop.permute.xlu0 %66
    %68 = vrot.lane.b32.xlu0 %v30, 114
    %v69 = vpop.permute.xlu0 %68
    %70 = vrot.lane.b32.xlu0 %v31, 114
    %v71 = vpop.permute.xlu0 %70
    %72 = vrot.lane.b32.xlu0 %v32, 114
    %v73 = vpop.permute.xlu0 %72
    %74 = vrot.lane.b32.xlu0 %v33, 114
    %v75 = vpop.permute.xlu0 %74
    %76 = vrot.lane.b32.xlu0 %v34, 114
    %v77 = vpop.permute.xlu0 %76
    %78 = vrot.lane.b32.xlu0 %v35, 114
    %v79 = vpop.permute.xlu0 %78
    %80 = vrot.lane.b32.xlu0 %v36, 114
    %v81 = vpop.permute.xlu0 %80
    %82 = vrot.lane.b32.xlu0 %v37, 114
    %v83 = vpop.permute.xlu0 %82
    %84 = vrot.lane.b32.xlu0 %v38, 114
    %v85 = vpop.permute.xlu0 %84
    %86 = vrot.lane.b32.xlu0 %v39, 114
    %v87 = vpop.permute.xlu0 %86
    %104 = vrot.lane.b32.xlu0 %v24, 2
    %v105 = vpop.permute.xlu0 %104
    %106 = vrot.lane.b32.xlu0 %v25, 2
    %v107 = vpop.permute.xlu0 %106
    %108 = vrot.lane.b32.xlu0 %v26, 2
    %v109 = vpop.permute.xlu0 %108
    %110 = vrot.lane.b32.xlu0 %v27, 2
    %v111 = vpop.permute.xlu0 %110
    %112 = vrot.lane.b32.xlu0 %v28, 2
    %v113 = vpop.permute.xlu0 %112
    %114 = vrot.lane.b32.xlu0 %v29, 2
    %v115 = vpop.permute.xlu0 %114
    %116 = vrot.lane.b32.xlu0 %v30, 2
    %v117 = vpop.permute.xlu0 %116
    %118 = vrot.lane.b32.xlu0 %v31, 2
    %v119 = vpop.permute.xlu0 %118
    %120 = vrot.lane.b32.xlu0 %v32, 2
    %v121 = vpop.permute.xlu0 %120
    %122 = vrot.lane.b32.xlu0 %v33, 2
    %v123 = vpop.permute.xlu0 %122
    %124 = vrot.lane.b32.xlu0 %v34, 2
    %v125 = vpop.permute.xlu0 %124
    %126 = vrot.lane.b32.xlu0 %v35, 2
    %v127 = vpop.permute.xlu0 %126
    %128 = vrot.lane.b32.xlu0 %v36, 2
    %v129 = vpop.permute.xlu0 %128
    %130 = vrot.lane.b32.xlu0 %v37, 2
    %v131 = vpop.permute.xlu0 %130
    %132 = vrot.lane.b32.xlu0 %v38, 2
    %v133 = vpop.permute.xlu0 %132
    %134 = vrot.lane.b32.xlu0 %v39, 2
    %v135 = vpop.permute.xlu0 %134
    %152 = vrot.lane.b32.xlu0 %v24, 18
    %v153 = vpop.permute.xlu0 %152
    %154 = vrot.lane.b32.xlu0 %v25, 18
    %v155 = vpop.permute.xlu0 %154
    %156 = vrot.lane.b32.xlu0 %v26, 18
    %v157 = vpop.permute.xlu0 %156
    %158 = vrot.lane.b32.xlu0 %v27, 18
    %v159 = vpop.permute.xlu0 %158
    %160 = vrot.lane.b32.xlu0 %v28, 18
    %v161 = vpop.permute.xlu0 %160
    %162 = vrot.lane.b32.xlu0 %v29, 18
    %v163 = vpop.permute.xlu0 %162
    %164 = vrot.lane.b32.xlu0 %v30, 18
    %v165 = vpop.permute.xlu0 %164
    %166 = vrot.lane.b32.xlu0 %v31, 18
    %v167 = vpop.permute.xlu0 %166
    %168 = vrot.lane.b32.xlu0 %v32, 18
    %v169 = vpop.permute.xlu0 %168
    %170 = vrot.lane.b32.xlu0 %v33, 18
    %v171 = vpop.permute.xlu0 %170
    %172 = vrot.lane.b32.xlu0 %v34, 18
    %v173 = vpop.permute.xlu0 %172
    %174 = vrot.lane.b32.xlu0 %v35, 18
    %v175 = vpop.permute.xlu0 %174
    %176 = vrot.lane.b32.xlu0 %v36, 18
    %v177 = vpop.permute.xlu0 %176
    %178 = vrot.lane.b32.xlu0 %v37, 18
    %v179 = vpop.permute.xlu0 %178
    %180 = vrot.lane.b32.xlu0 %v38, 18
    %v181 = vpop.permute.xlu0 %180
    %182 = vrot.lane.b32.xlu0 %v39, 18
    %v183 = vpop.permute.xlu0 %182
    %vm200 = vcmask 15360
    %v201 = vsel %vm200, %v57, %v105
    %v202 = vsel %vm200, %v59, %v107
    %v203 = vsel %vm200, %v61, %v109
    %v204 = vsel %vm200, %v63, %v111
    %v205 = vsel %vm200, %v65, %v113
    %v206 = vsel %vm200, %v67, %v115
    %v207 = vsel %vm200, %v69, %v117
    %v208 = vsel %vm200, %v71, %v119
    %v209 = vsel %vm200, %v73, %v121
    %v210 = vsel %vm200, %v75, %v123
    %v211 = vsel %vm200, %v77, %v125
    %v212 = vsel %vm200, %v79, %v127
    %v213 = vsel %vm200, %v81, %v129
    %v214 = vsel %vm200, %v83, %v131
    %v215 = vsel %vm200, %v85, %v133
    %v216 = vsel %vm200, %v87, %v135
    %vm217 = vcmask 146432
    %v218 = vsel %vm217, %v201, %v153
    %v219 = vsel %vm217, %v202, %v155
    %v220 = vsel %vm217, %v203, %v157
    %v221 = vsel %vm217, %v204, %v159
    %v222 = vsel %vm217, %v205, %v161
    %v223 = vsel %vm217, %v206, %v163
    %v224 = vsel %vm217, %v207, %v165
    %v225 = vsel %vm217, %v208, %v167
    %v226 = vsel %vm217, %v209, %v169
    %v227 = vsel %vm217, %v210, %v171
    %v228 = vsel %vm217, %v211, %v173
    %v229 = vsel %vm217, %v212, %v175
    %v230 = vsel %vm217, %v213, %v177
    %v231 = vsel %vm217, %v214, %v179
    %v232 = vsel %vm217, %v215, %v181
    %v233 = vsel %vm217, %v216, %v183
    %vm234 = vcmask 162816
    %235 = vst.msk [vmem:[%s1 + $0x2] sm:$0xff] %vm234, %v218
    %236 = vst.msk [vmem:[%s1 + $0xa] sm:$0xff] %vm234, %v219
    %237 = vst.msk [vmem:[%s1 + $0x1a] sm:$0xff] %vm234, %v220
    %238 = vst.msk [vmem:[%s1 + $0x22] sm:$0xff] %vm234, %v221
    %239 = vst.msk [vmem:[%s1 + $0x32] sm:$0xff] %vm234, %v222
    %240 = vst.msk [vmem:[%s1 + $0x3a] sm:$0xff] %vm234, %v223
    %241 = vst.msk [vmem:[%s1 + $0x4a] sm:$0xff] %vm234, %v224
    %242 = vst.msk [vmem:[%s1 + $0x52] sm:$0xff] %vm234, %v225
    %243 = vst.msk [vmem:[%s1 + $0x62] sm:$0xff] %vm234, %v226
    %244 = vst.msk [vmem:[%s1 + $0x6a] sm:$0xff] %vm234, %v227
    %245 = vst.msk [vmem:[%s1 + $0x7a] sm:$0xff] %vm234, %v228
    %246 = vst.msk [vmem:[%s1 + $0x82] sm:$0xff] %vm234, %v229
    %247 = vst.msk [vmem:[%s1 + $0x92] sm:$0xff] %vm234, %v230
    %248 = vst.msk [vmem:[%s1 + $0x9a] sm:$0xff] %vm234, %v231
    %249 = vst.msk [vmem:[%s1 + $0xaa] sm:$0xff] %vm234, %v232
    %250 = vst.msk [vmem:[%s1 + $0xb2] sm:$0xff] %vm234, %v233
    %vm251 = vcmask 156672
    %252 = vst.msk [vmem:[%s1] sm:$0x3] %vm251, 0.0
    %253 = vst.msk [vmem:[%s1 + $0x18] sm:$0x3] %vm251, 0.0
    %254 = vst.msk [vmem:[%s1 + $0x30] sm:$0x3] %vm251, 0.0
    %255 = vst.msk [vmem:[%s1 + $0x48] sm:$0x3] %vm251, 0.0
    %256 = vst.msk [vmem:[%s1 + $0x60] sm:$0x3] %vm251, 0.0
    %257 = vst.msk [vmem:[%s1 + $0x78] sm:$0x3] %vm251, 0.0
    %258 = vst.msk [vmem:[%s1 + $0x90] sm:$0x3] %vm251, 0.0
    %259 = vst.msk [vmem:[%s1 + $0xa8] sm:$0x3] %vm251, 0.0
    %260 = vst.msk [vmem:[%s1 + $0x12] sm:$0x3] %vm251, 0.0
    %261 = vst.msk [vmem:[%s1 + $0x2a] sm:$0x3] %vm251, 0.0
    %262 = vst.msk [vmem:[%s1 + $0x42] sm:$0x3] %vm251, 0.0
    %263 = vst.msk [vmem:[%s1 + $0x5a] sm:$0x3] %vm251, 0.0
    %264 = vst.msk [vmem:[%s1 + $0x72] sm:$0x3] %vm251, 0.0
    %265 = vst.msk [vmem:[%s1 + $0x8a] sm:$0x3] %vm251, 0.0
    %266 = vst.msk [vmem:[%s1 + $0xa2] sm:$0x3] %vm251, 0.0
    %267 = vst.msk [vmem:[%s1 + $0xba] sm:$0x3] %vm251, 0.0
    // Predicated region
    $region10: #{tpu_custom_call.1} parent=1 // pred_check
      _
    $region11: #{tpu_custom_call.1} parent=1 // pred_check_branch
      %269 = sbr.rel (0) target = $region13
    $region12: #{tpu_custom_call.1} parent=1 // pred_region
      _
    $region13: #{tpu_custom_call.1} parent=1 // pred_fallthru
      _
    // Predicated region
    $region14: #{tpu_custom_call.1} parent=1 // pred_check
      _
    $region15: #{tpu_custom_call.1} parent=1 // pred_check_branch
      %271 = sbr.rel (0) target = $region17
    $region16: #{tpu_custom_call.1} parent=1 // pred_region
      _
    $region17: #{tpu_custom_call.1} parent=1 // pred_fallthru
      _
    %272 = vsyncpa [#allocation3], 1

</llo_original>
